<compile_context>
chip_gen: v5e
topology: v5e:2x2
jax: 0.10.0
libtpu: 0.0.40
codegen_flags: <defaults>
</compile_context>

<pallas_src>
import jax
import jax.numpy as jnp
from jax.experimental import pallas as pl
from jax.experimental.pallas import tpu as pltpu

LANE = 128
HIDDEN = 256
BF16_SUBLANE = 16          # bf16 packs 16 sublanes per vreg
MAX_TILE = 2048            # rows per grid step (VMEM-safe on all generations)


def _round_up(n, m):
    return ((n + m - 1) // m) * m


def _cdiv(a, b):
    return -(-a // b)


def _mlp_kernel(x_ref, w1_ref, b1_ref, w2_ref, b2_ref, w3_ref, b3_ref,
                o_ref, xpad_ref):
    # Zero-extend the (tb, in_size) bf16 input tile to the lane-aligned
    # (tb, in_pad) scratch. Padded columns are exactly zero, matching the
    # zero-padded rows of w1 -> identical math, no HBM-side padding traffic.
    in_size = x_ref.shape[1]
    xpad_ref[...] = jnp.zeros_like(xpad_ref)
    xpad_ref[:, :in_size] = x_ref[...]
    x = xpad_ref[...]                                   # (tb, in_pad) bf16

    # Layer 1: in_pad -> 256, ReLU. bf16 MXU matmul, f32 accumulation.
    h = jnp.dot(x, w1_ref[...], preferred_element_type=jnp.float32)
    h = jnp.maximum(h + b1_ref[...], 0.0)

    # Layer 2: 256 -> 256, ReLU.
    h = jnp.dot(h.astype(jnp.bfloat16), w2_ref[...],
                preferred_element_type=jnp.float32)
    h = jnp.maximum(h + b2_ref[...], 0.0)

    # Output layer: 256 -> out_size (no activation). True (narrow) output width:
    # masked vst on 2 lanes beats streaming 128 f32 lanes per row by ~60x bytes.
    o = jnp.dot(h.astype(jnp.bfloat16), w3_ref[...],
                preferred_element_type=jnp.float32)
    o_ref[...] = (o + b3_ref[...]).astype(o_ref.dtype)


def init_params(key, input_size, output_size):
    """f32 params mirroring PyTorch nn.Linear default init (uniform +/- 1/sqrt(fan_in)).
    Weights stored (in_features, out_features) — transposed vs torch's (out, in)."""
    dims = [(input_size, HIDDEN), (HIDDEN, HIDDEN), (HIDDEN, output_size)]
    params = {}
    for idx, (fan_in, fan_out) in enumerate(dims, start=1):
        key, kw, kb = jax.random.split(key, 3)
        bound = 1.0 / (fan_in ** 0.5)
        params[f"w{idx}"] = jax.random.uniform(
            kw, (fan_in, fan_out), jnp.float32, -bound, bound)
        params[f"b{idx}"] = jax.random.uniform(
            kb, (1, fan_out), jnp.float32, -bound, bound)  # 2D for TPU lanes
    return params


def prep_params(params, input_size, output_size):
    """One-time host prep: zero-pad w1's K dim to a lane multiple, cast weights
    to bf16 (halves weight DMA, native MXU rate). Biases stay f32 (f32 epilogue).
    Exact: padded w1 rows are zero and multiply in-kernel zero columns of x."""
    in_pad = _round_up(max(input_size, LANE), LANE)
    w1 = jnp.zeros((in_pad, HIDDEN), jnp.float32).at[:input_size, :].set(params["w1"])
    return {
        "w1": w1.astype(jnp.bfloat16), "b1": params["b1"],
        "w2": params["w2"].astype(jnp.bfloat16), "b2": params["b2"],
        "w3": params["w3"].astype(jnp.bfloat16), "b3": params["b3"],
    }


def heart_model_small_forward(x, kparams):
    """x: (B, input_size) f32. kparams: output of prep_params. Returns (B, output_size) f32."""
    B, in_size = x.shape
    in_pad = kparams["w1"].shape[0]
    out_size = kparams["w3"].shape[1]

    # Batch tile: big enough to amortize the ~0.35 us per-step pipeline overhead,
    # capped at MAX_TILE rows, and chosen so large batches get >= 2 grid steps
    # (v7x has 2 TensorCores; a length-1 grid would idle one of them).
    n_steps = max(2, _cdiv(B, MAX_TILE))
    tb = min(MAX_TILE, _round_up(_cdiv(B, n_steps), BF16_SUBLANE))
    grid = _cdiv(B, tb)
    b_pad = grid * tb

    # bf16 operand cast in the wrapper (fuses with the tiny row pad, if any).
    xb = x.astype(jnp.bfloat16)
    if b_pad != B:
        xb = jnp.pad(xb, ((0, b_pad - B), (0, 0)))   # only 2*in_size bytes/row

    w1, b1, w2, b2, w3, b3 = (kparams[k] for k in ("w1", "b1", "w2", "b2", "w3", "b3"))
    const = lambda a: pl.BlockSpec(a.shape, lambda i: (0, 0))  # VMEM-resident weights

    out = pl.pallas_call(
        _mlp_kernel,
        out_shape=jax.ShapeDtypeStruct((b_pad, out_size), jnp.float32),
        grid=(grid,),
        in_specs=[
            pl.BlockSpec((tb, in_size), lambda i: (i, 0)),   # last dim == full dim -> legal
            const(w1), const(b1), const(w2), const(b2), const(w3), const(b3),
        ],
        out_specs=pl.BlockSpec((tb, out_size), lambda i: (i, 0)),
        scratch_shapes=[pltpu.VMEM((tb, in_pad), jnp.bfloat16)],
        compiler_params=pltpu.CompilerParams(
            dimension_semantics=("parallel",),
            vmem_limit_bytes=32 << 20,
        ),
    )(xb, w1, b1, w2, b2, w3, b3)

    return out if b_pad == B else out[:B]


def reference_forward_f32(x, p):
    """Pure f32 reference matching the PyTorch module semantics."""
    h = jnp.maximum(x @ p["w1"] + p["b1"], 0.0)
    h = jnp.maximum(h @ p["w2"] + p["b2"], 0.0)
    return h @ p["w3"] + p["b3"]


def reference_forward_matched(x, kp):
    """Mirrors the kernel math (bf16 operands, f32 accumulation, zero-padded K)."""
    in_size = x.shape[1]
    xb = x.astype(jnp.bfloat16)
    h = jnp.dot(xb, kp["w1"][:in_size], preferred_element_type=jnp.float32)
    h = jnp.maximum(h + kp["b1"], 0.0)
    h = jnp.dot(h.astype(jnp.bfloat16), kp["w2"], preferred_element_type=jnp.float32)
    h = jnp.maximum(h + kp["b2"], 0.0)
    return jnp.dot(h.astype(jnp.bfloat16), kp["w3"],
                   preferred_element_type=jnp.float32) + kp["b3"]


if __name__ == "__main__":
    input_size = 13   # heart-disease feature count
    output_size = 2
    batch = 4

    key = jax.random.PRNGKey(0)
    kx, kp = jax.random.split(key)
    x = jax.random.normal(kx, (batch, input_size), jnp.float32)

    params = init_params(kp, input_size, output_size)
    kparams = prep_params(params, input_size, output_size)

    out = heart_model_small_forward(x, kparams)
    out = jax.block_until_ready(out)
    assert out.shape == (batch, output_size)

    # Exact-math check (same bf16 operands / f32 accumulation as the kernel).
    ref_matched = reference_forward_matched(x, kparams)
    assert bool(jnp.allclose(out, ref_matched, atol=1e-3, rtol=1e-3)), \
        "mismatch vs matched reference"

    # Semantic check vs the pure-f32 PyTorch-equivalent forward (looser: bf16 weights).
    ref_f32 = reference_forward_f32(x, params)
    assert bool(jnp.allclose(out, ref_f32, atol=5e-2, rtol=5e-2)), \
        "mismatch vs f32 reference"

    print("KERNEL_OK")
</pallas_src>

<mosaic_0001>
module attributes {stable_mosaic.version = 11 : i64} {
  func.func @_mlp_kernel(%arg0: i32, %arg1: memref<16x13xbf16, #tpu.memory_space<vmem>>, %arg2: memref<128x256xbf16, #tpu.memory_space<vmem>>, %arg3: memref<1x256xf32, #tpu.memory_space<vmem>>, %arg4: memref<256x256xbf16, #tpu.memory_space<vmem>>, %arg5: memref<1x256xf32, #tpu.memory_space<vmem>>, %arg6: memref<256x2xbf16, #tpu.memory_space<vmem>>, %arg7: memref<1x2xf32, #tpu.memory_space<vmem>>, %arg8: memref<16x2xf32, #tpu.memory_space<vmem>>, %arg9: memref<16x128xbf16, #tpu.memory_space<vmem>>) attributes {dimension_semantics = [#tpu.dimension_semantics<parallel>], iteration_bounds = array<i64: 1>, scalar_prefetch = 0 : i64, scratch_operands = 1 : i64, tpu.core_type = #tpu.core_type<tc>, window_params = [{transform_indices = @transform_0, window_bounds = array<i64: 16, 13>}, {pipeline_mode = #tpu.pipeline_mode<synchronous>, transform_indices = @transform_1, window_bounds = array<i64: 128, 256>}, {pipeline_mode = #tpu.pipeline_mode<synchronous>, transform_indices = @transform_2, window_bounds = array<i64: 1, 256>}, {pipeline_mode = #tpu.pipeline_mode<synchronous>, transform_indices = @transform_3, window_bounds = array<i64: 256, 256>}, {pipeline_mode = #tpu.pipeline_mode<synchronous>, transform_indices = @transform_4, window_bounds = array<i64: 1, 256>}, {pipeline_mode = #tpu.pipeline_mode<synchronous>, transform_indices = @transform_5, window_bounds = array<i64: 256, 2>}, {pipeline_mode = #tpu.pipeline_mode<synchronous>, transform_indices = @transform_6, window_bounds = array<i64: 1, 2>}, {transform_indices = @transform_7, window_bounds = array<i64: 16, 2>}]} {
    %cst = arith.constant 0.000000e+00 : bf16
    %0 = vector.broadcast %cst : bf16 to vector<16x128xbf16>
    %c0 = arith.constant 0 : index
    %c0_0 = arith.constant 0 : index
    %1 = vector.load %arg9[%c0, %c0_0] : memref<16x128xbf16, #tpu.memory_space<vmem>>, vector<16x128xbf16>
    tpu.vector_store %arg9[%c0, %c0_0], %0 {strides = array<i32>} : memref<16x128xbf16, #tpu.memory_space<vmem>>, vector<16x128xbf16>,
    %c0_1 = arith.constant 0 : index
    %c0_2 = arith.constant 0 : index
    %2 = vector.load %arg1[%c0_1, %c0_2] : memref<16x13xbf16, #tpu.memory_space<vmem>>, vector<16x13xbf16>
    %c0_3 = arith.constant 0 : index
    %c0_4 = arith.constant 0 : index
    %3 = vector.load %arg9[%c0_3, %c0_4] : memref<16x128xbf16, #tpu.memory_space<vmem>>, vector<16x13xbf16>
    tpu.vector_store %arg9[%c0_3, %c0_4], %2 {strides = array<i32>} : memref<16x128xbf16, #tpu.memory_space<vmem>>, vector<16x13xbf16>,
    %c0_5 = arith.constant 0 : index
    %c0_6 = arith.constant 0 : index
    %4 = vector.load %arg9[%c0_5, %c0_6] : memref<16x128xbf16, #tpu.memory_space<vmem>>, vector<16x128xbf16>
    %c0_7 = arith.constant 0 : index
    %c0_8 = arith.constant 0 : index
    %5 = vector.load %arg2[%c0_7, %c0_8] : memref<128x256xbf16, #tpu.memory_space<vmem>>, vector<128x256xbf16>
    %cst_9 = arith.constant dense<0.000000e+00> : vector<16x256xf32>
    %6 = tpu.matmul %4, %5, %cst_9 {dimension_numbers = #tpu.dot_dimension_numbers<[1], [0], [0], [1], [0, 0, 1, 1], [], []>} : vector<16x128xbf16>, vector<128x256xbf16>, vector<16x256xf32> -> vector<16x256xf32>
    %c0_10 = arith.constant 0 : index
    %c0_11 = arith.constant 0 : index
    %7 = vector.load %arg3[%c0_10, %c0_11] : memref<1x256xf32, #tpu.memory_space<vmem>>, vector<1x256xf32>
    %8 = vector.broadcast %7 : vector<1x256xf32> to vector<16x256xf32>
    %9 = arith.addf %6, %8 : vector<16x256xf32>
    %cst_12 = arith.constant 0.000000e+00 : f32
    %10 = vector.broadcast %cst_12 : f32 to vector<16x256xf32>
    %11 = arith.maximumf %9, %10 : vector<16x256xf32>
    %12 = arith.truncf %11 : vector<16x256xf32> to vector<16x256xbf16>
    %c0_13 = arith.constant 0 : index
    %c0_14 = arith.constant 0 : index
    %13 = vector.load %arg4[%c0_13, %c0_14] : memref<256x256xbf16, #tpu.memory_space<vmem>>, vector<256x256xbf16>
    %cst_15 = arith.constant dense<0.000000e+00> : vector<16x256xf32>
    %14 = tpu.matmul %12, %13, %cst_15 {dimension_numbers = #tpu.dot_dimension_numbers<[1], [0], [0], [1], [0, 0, 1, 1], [], []>} : vector<16x256xbf16>, vector<256x256xbf16>, vector<16x256xf32> -> vector<16x256xf32>
    %c0_16 = arith.constant 0 : index
    %c0_17 = arith.constant 0 : index
    %15 = vector.load %arg5[%c0_16, %c0_17] : memref<1x256xf32, #tpu.memory_space<vmem>>, vector<1x256xf32>
    %16 = vector.broadcast %15 : vector<1x256xf32> to vector<16x256xf32>
    %17 = arith.addf %14, %16 : vector<16x256xf32>
    %cst_18 = arith.constant 0.000000e+00 : f32
    %18 = vector.broadcast %cst_18 : f32 to vector<16x256xf32>
    %19 = arith.maximumf %17, %18 : vector<16x256xf32>
    %20 = arith.truncf %19 : vector<16x256xf32> to vector<16x256xbf16>
    %c0_19 = arith.constant 0 : index
    %c0_20 = arith.constant 0 : index
    %21 = vector.load %arg6[%c0_19, %c0_20] : memref<256x2xbf16, #tpu.memory_space<vmem>>, vector<256x2xbf16>
    %cst_21 = arith.constant dense<0.000000e+00> : vector<16x2xf32>
    %22 = tpu.matmul %20, %21, %cst_21 {dimension_numbers = #tpu.dot_dimension_numbers<[1], [0], [0], [1], [0, 0, 1, 1], [], []>} : vector<16x256xbf16>, vector<256x2xbf16>, vector<16x2xf32> -> vector<16x2xf32>
    %c0_22 = arith.constant 0 : index
    %c0_23 = arith.constant 0 : index
    %23 = vector.load %arg7[%c0_22, %c0_23] : memref<1x2xf32, #tpu.memory_space<vmem>>, vector<1x2xf32>
    %24 = vector.broadcast %23 : vector<1x2xf32> to vector<16x2xf32>
    %25 = arith.addf %22, %24 : vector<16x2xf32>
    %c0_24 = arith.constant 0 : index
    %c0_25 = arith.constant 0 : index
    %26 = vector.load %arg8[%c0_24, %c0_25] : memref<16x2xf32, #tpu.memory_space<vmem>>, vector<16x2xf32>
    tpu.vector_store %arg8[%c0_24, %c0_25], %25 {strides = array<i32>} : memref<16x2xf32, #tpu.memory_space<vmem>>, vector<16x2xf32>,
    return
  }
  func.func @transform_0(%arg0: i32) -> (i32, i32) {
    %c0_i32 = arith.constant 0 : i32
    %c0_i32_0 = arith.constant 0 : i32
    return %arg0, %c0_i32 : i32, i32
  }
  func.func @transform_1(%arg0: i32) -> (i32, i32) {
    %c0_i32 = arith.constant 0 : i32
    %c0_i32_0 = arith.constant 0 : i32
    %c0_i32_1 = arith.constant 0 : i32
    return %c0_i32, %c0_i32_0 : i32, i32
  }
  func.func @transform_2(%arg0: i32) -> (i32, i32) {
    %c0_i32 = arith.constant 0 : i32
    %c0_i32_0 = arith.constant 0 : i32
    %c0_i32_1 = arith.constant 0 : i32
    return %c0_i32, %c0_i32_0 : i32, i32
  }
  func.func @transform_3(%arg0: i32) -> (i32, i32) {
    %c0_i32 = arith.constant 0 : i32
    %c0_i32_0 = arith.constant 0 : i32
    %c0_i32_1 = arith.constant 0 : i32
    return %c0_i32, %c0_i32_0 : i32, i32
  }
  func.func @transform_4(%arg0: i32) -> (i32, i32) {
    %c0_i32 = arith.constant 0 : i32
    %c0_i32_0 = arith.constant 0 : i32
    %c0_i32_1 = arith.constant 0 : i32
    return %c0_i32, %c0_i32_0 : i32, i32
  }
  func.func @transform_5(%arg0: i32) -> (i32, i32) {
    %c0_i32 = arith.constant 0 : i32
    %c0_i32_0 = arith.constant 0 : i32
    %c0_i32_1 = arith.constant 0 : i32
    return %c0_i32, %c0_i32_0 : i32, i32
  }
  func.func @transform_6(%arg0: i32) -> (i32, i32) {
    %c0_i32 = arith.constant 0 : i32
    %c0_i32_0 = arith.constant 0 : i32
    %c0_i32_1 = arith.constant 0 : i32
    return %c0_i32, %c0_i32_0 : i32, i32
  }
  func.func @transform_7(%arg0: i32) -> (i32, i32) {
    %c0_i32 = arith.constant 0 : i32
    %c0_i32_0 = arith.constant 0 : i32
    return %arg0, %c0_i32 : i32, i32
  }
}

</mosaic_0001>

<llo_original>
// kernel: tpu_custom_call.1
$region0: #{tpu_custom_call.1}
  #allocation0 [shape = 'u32[]', space=smem, size = 0x4, offset = 0x4, fixed_abs, tag = 'smem constant byte address 0x4 - core index']
  #allocation1 [shape = 'u32[72,128]{1,0:T(1,128)}', space=vmem, size = 0x9000, scoped, tag = 'internal scratch']
  #allocation2 [shape = 'bf16[16,128]{1,0:T(8,128)(2,1)}', space=vmem, size = 0x1000, scoped, tag = 'scratch operand']
  %s0 = inlined_call_operand.hbm [shape: bf16[16,13], index: 0, kind: input, shape index: {}]
  %s1 = inlined_call_operand.vmem [shape: bf16[128,256], index: 1, kind: input, shape index: {}]
  %s2 = inlined_call_operand.vmem [shape: f32[1,256], index: 2, kind: input, shape index: {}]
  %s3 = inlined_call_operand.hbm [shape: bf16[256,256], index: 3, kind: input, shape index: {}]
  %s4 = inlined_call_operand.hbm [shape: f32[1,256], index: 4, kind: input, shape index: {}]
  %s5 = inlined_call_operand.vmem [shape: bf16[256,2], index: 5, kind: input, shape index: {}]
  %s6 = inlined_call_operand.vmem [shape: f32[1,2], index: 6, kind: input, shape index: {}]
  %s7 = inlined_call_operand.vmem [shape: f32[16,2], index: 7, kind: output, shape index: {}]
  %s8 = sld [smem:[#allocation0]]
  $region50: #{tpu_custom_call.1} parent=0
    _
  %s10 = ssub.s32 1, %s8
  %s11 = scalar_select 0, %s10, %s8
  $region1: #{tpu_custom_call.1} parent=0
    #allocation3 [shape = 'u8[4096]{0}', space=vmem, size = 0x1000, scoped, tag = 'input window, operand 0, single buffered']
    #allocation4 [shape = 's32[1]{0}', space=sflag, size = 0x4, scoped, tag = 'scoped memory for tpu_custom_call.1']
    #allocation5 [shape = 'u8[131072]{0}', space=vmem, size = 0x20000, scoped, tag = 'input window, operand 3, single buffered']
    #allocation6 [shape = 's32[1]{0}', space=sflag, size = 0x4, scoped, tag = 'scoped memory for tpu_custom_call.1']
    #allocation7 [shape = 'u8[1024]{0}', space=vmem, size = 0x400, scoped, tag = 'input window, operand 4, single buffered']
    %12 = vsyncpa [#allocation4], 0
    %13 = vsyncpa [#allocation6], 0
    // Predicated region
    $region2: #{tpu_custom_call.1} parent=1 // pred_check
      _
    $region3: #{tpu_custom_call.1} parent=1 // pred_check_branch
      %15 = sbr.rel (0) target = $region5
    $region4: #{tpu_custom_call.1} parent=1 // pred_region
      %17 = vsyncadd [#allocation4], 0
      %s18 = sshll.u32 %s0, 4
      %s19 = int_to_ptr.hbm [resolvable:$true] %s18
      %s20 = sshll.u32 [#allocation3], 4
      %s21 = int_to_ptr.vmem [resolvable:$true] %s20
      %26 = dma.hbm_to_vmem [thread:$0]  %s19, 128, %s21, [#allocation4], 64, 64, 4
    $region5: #{tpu_custom_call.1} parent=1 // pred_fallthru
      _
    // Predicated region
    $region6: #{tpu_custom_call.1} parent=1 // pred_check
      _
    $region7: #{tpu_custom_call.1} parent=1 // pred_check_branch
      %28 = sbr.rel (0) target = $region9
    $region8: #{tpu_custom_call.1} parent=1 // pred_region
      _
    $region9: #{tpu_custom_call.1} parent=1 // pred_fallthru
      _
    // Predicated region
    $region10: #{tpu_custom_call.1} parent=1 // pred_check
      _
    $region11: #{tpu_custom_call.1} parent=1 // pred_check_branch
      %30 = sbr.rel (0) target = $region13
    $region12: #{tpu_custom_call.1} parent=1 // pred_region
      _
    $region13: #{tpu_custom_call.1} parent=1 // pred_fallthru
      _
    // Predicated region
    $region14: #{tpu_custom_call.1} parent=1 // pred_check
      _
    $region15: #{tpu_custom_call.1} parent=1 // pred_check_branch
      %32 = sbr.rel (0) target = $region17
    $region16: #{tpu_custom_call.1} parent=1 // pred_region
      %34 = vsyncadd [#allocation6], 0
      %s35 = sshll.u32 %s3, 4
      %s36 = int_to_ptr.hbm [resolvable:$true] %s35
      %s37 = sshll.u32 [#allocation5], 4
      %s38 = int_to_ptr.vmem [resolvable:$true] %s37
      %43 = dma.hbm_to_vmem [thread:$0]  %s36, 4096, %s38, [#allocation6], 128, 128, 8
    $region17: #{tpu_custom_call.1} parent=1 // pred_fallthru
      _
    // Predicated region
    $region18: #{tpu_custom_call.1} parent=1 // pred_check
      _
    $region19: #{tpu_custom_call.1} parent=1 // pred_check_branch
      %45 = sbr.rel (0) target = $region21
    $region20: #{tpu_custom_call.1} parent=1 // pred_region
      %47 = vsyncadd [#allocation6], 0
      %s49 = sshll.u32 %s4, 4
      %s50 = int_to_ptr.hbm [resolvable:$true] %s49
      %s51 = sshll.u32 [#allocation7], 4
      %s52 = int_to_ptr.vmem [resolvable:$true] %s51
      %54 = dma.hbm_to_vmem [thread:$0]  %s50, 32, %s52, [#allocation6]
    $region21: #{tpu_custom_call.1} parent=1 // pred_fallthru
      _
    // Predicated region
    $region22: #{tpu_custom_call.1} parent=1 // pred_check
      _
    $region23: #{tpu_custom_call.1} parent=1 // pred_check_branch
      %56 = sbr.rel (0) target = $region25
    $region24: #{tpu_custom_call.1} parent=1 // pred_region
      _
    $region25: #{tpu_custom_call.1} parent=1 // pred_fallthru
      _
    // Predicated region
    $region26: #{tpu_custom_call.1} parent=1 // pred_check
      _
    $region27: #{tpu_custom_call.1} parent=1 // pred_check_branch
      %58 = sbr.rel (0) target = $region29
    $region28: #{tpu_custom_call.1} parent=1 // pred_region
      _
    $region29: #{tpu_custom_call.1} parent=1 // pred_fallthru
      _
    // Predicated region
    $region30: #{tpu_custom_call.1} parent=1 // pred_check
      _
    $region31: #{tpu_custom_call.1} parent=1 // pred_check_branch
      %60 = sbr.rel (0) target = $region33
    $region32: #{tpu_custom_call.1} parent=1 // pred_region
      %62 = dma.done [#allocation4], 128
    $region33: #{tpu_custom_call.1} parent=1 // pred_fallthru
      _
    // Predicated region
    $region34: #{tpu_custom_call.1} parent=1 // pred_check
      _
    $region35: #{tpu_custom_call.1} parent=1 // pred_check_branch
      %64 = sbr.rel (0) target = $region37
    $region36: #{tpu_custom_call.1} parent=1 // pred_region
      %66 = dma.done [#allocation6], 4096
    $region37: #{tpu_custom_call.1} parent=1 // pred_fallthru
      _
    // Predicated region
    $region38: #{tpu_custom_call.1} parent=1 // pred_check
      _
    $region39: #{tpu_custom_call.1} parent=1 // pred_check_branch
      %68 = sbr.rel (0) target = $region41
    $region40: #{tpu_custom_call.1} parent=1 // pred_region
      %70 = dma.done [#allocation6], 32
    $region41: #{tpu_custom_call.1} parent=1 // pred_fallthru
      _
    %72 = vst [vmem:[#allocation2] sm:$0xf] 0
    %73 = vst [vmem:[#allocation2 + $0x4] sm:$0xf] 0
    %v74 = vld [vmem:[#allocation3] sm:$0xf]
    %v75 = vld [vmem:[#allocation3 + $0x4] sm:$0xf]
    %vm76 = vcmask 101376
    %77 = vst.msk [vmem:[#allocation2] sm:$0xf] %vm76, %v74
    %78 = vst.msk [vmem:[#allocation2 + $0x4] sm:$0xf] %vm76, %v75
    %v79 = vld [vmem:[#allocation2] sm:$0xf]
    %v80 = vld [vmem:[#allocation2 + $0x4] sm:$0xf]
    %v81 = vld [vmem:[%s1] sm:$0xff]
    %v82 = vld [vmem:[%s1 + $0x8] sm:$0xff]
    %v83 = vld [vmem:[%s1 + $0x10] sm:$0xff]
    %v84 = vld [vmem:[%s1 + $0x18] sm:$0xff]
    %v85 = vld [vmem:[%s1 + $0x20] sm:$0xff]
    %v86 = vld [vmem:[%s1 + $0x28] sm:$0xff]
    %v87 = vld [vmem:[%s1 + $0x30] sm:$0xff]
    %v88 = vld [vmem:[%s1 + $0x38] sm:$0xff]
    %v89 = vld [vmem:[%s1 + $0x40] sm:$0xff]
    %v90 = vld [vmem:[%s1 + $0x48] sm:$0xff]
    %v91 = vld [vmem:[%s1 + $0x50] sm:$0xff]
    %v92 = vld [vmem:[%s1 + $0x58] sm:$0xff]
    %v93 = vld [vmem:[%s1 + $0x60] sm:$0xff]
    %v94 = vld [vmem:[%s1 + $0x68] sm:$0xff]
    %v95 = vld [vmem:[%s1 + $0x70] sm:$0xff]
    %v96 = vld [vmem:[%s1 + $0x78] sm:$0xff]
    %v97 = vld [vmem:[%s2] sm:$0x3]
    %v99 = vperm.slane %v97, 0
    %v100 = vperm.slane %v97, 1
    %v105 = vunpack.c.l.b16 %v79
    %v106 = vunpack.c.l.b16 %v80
    %v107 = vpack.c.b16 %v106, %v105
    %v125 = vunpack.c.l.b16 %v81
    %v126 = vunpack.c.h.b16 %v81
    %v127 = vunpack.c.l.b16 %v82
    %v128 = vunpack.c.h.b16 %v82
    %v129 = vunpack.c.l.b16 %v83
    %v130 = vunpack.c.h.b16 %v83
    %v131 = vunpack.c.l.b16 %v84
    %v132 = vunpack.c.h.b16 %v84
    %v133 = vunpack.c.l.b16 %v85
    %v134 = vunpack.c.h.b16 %v85
    %v135 = vunpack.c.l.b16 %v86
    %v136 = vunpack.c.h.b16 %v86
    %v137 = vunpack.c.l.b16 %v87
    %v138 = vunpack.c.h.b16 %v87
    %v139 = vunpack.c.l.b16 %v88
    %v140 = vunpack.c.h.b16 %v88
    %v141 = vunpack.c.l.b16 %v89
    %v142 = vunpack.c.h.b16 %v89
    %v143 = vunpack.c.l.b16 %v90
    %v144 = vunpack.c.h.b16 %v90
    %v145 = vunpack.c.l.b16 %v91
    %v146 = vunpack.c.h.b16 %v91
    %v147 = vunpack.c.l.b16 %v92
    %v148 = vunpack.c.h.b16 %v92
    %v149 = vunpack.c.l.b16 %v93
    %v150 = vunpack.c.h.b16 %v93
    %v151 = vunpack.c.l.b16 %v94
    %v152 = vunpack.c.h.b16 %v94
    %v153 = vunpack.c.l.b16 %v95
    %v154 = vunpack.c.h.b16 %v95
    %v155 = vunpack.c.l.b16 %v96
    %v156 = vunpack.c.h.b16 %v96
    %v157 = vpack.c.b16 %v127, %v125
    %v158 = vpack.c.b16 %v128, %v126
    %v159 = vpack.c.b16 %v131, %v129
    %v160 = vpack.c.b16 %v132, %v130
    %v161 = vpack.c.b16 %v135, %v133
    %v162 = vpack.c.b16 %v136, %v134
    %v163 = vpack.c.b16 %v139, %v137
    %v164 = vpack.c.b16 %v140, %v138
    %v165 = vpack.c.b16 %v143, %v141
    %v166 = vpack.c.b16 %v144, %v142
    %v167 = vpack.c.b16 %v147, %v145
    %v168 = vpack.c.b16 %v148, %v146
    %v169 = vpack.c.b16 %v151, %v149
    %v170 = vpack.c.b16 %v152, %v150
    %v171 = vpack.c.b16 %v155, %v153
    %v172 = vpack.c.b16 %v156, %v154
    %189 = vmatpush.bf16.msra.mxu0 %v171
    %190 = vmatpush.bf16.msra.mxu0 %v169
    %191 = vmatpush.bf16.msra.mxu0 %v167
    %192 = vmatpush.bf16.msra.mxu0 %v165
    %193 = vmatpush.bf16.msra.mxu0 %v163
    %194 = vmatpush.bf16.msra.mxu0 %v161
    %195 = vmatpush.bf16.msra.mxu0 %v159
    %196 = vmatpush.bf16.msra.mxu0 %v157
    %197 = vmatmul.bf16.gmra.mxu0 %v107
    %v198 = vpop.f32.mrf.mxu0
    %v199 = vadd.f32 %v99, %v198
    %v200 = vpop.f32.mrf.mxu0
    %v201 = vadd.f32 %v99, %v200
    %202 = vdwg.mxu0
    %203 = vmatpush.bf16.msra.mxu0 %v172
    %204 = vmatpush.bf16.msra.mxu0 %v170
    %205 = vmatpush.bf16.msra.mxu0 %v168
    %206 = vmatpush.bf16.msra.mxu0 %v166
    %207 = vmatpush.bf16.msra.mxu0 %v164
    %208 = vmatpush.bf16.msra.mxu0 %v162
    %209 = vmatpush.bf16.msra.mxu0 %v160
    %210 = vmatpush.bf16.msra.mxu0 %v158
    %211 = vmatmul.bf16.gmra.mxu0 %v107
    %v212 = vpop.f32.mrf.mxu0
    %v213 = vadd.f32 %v100, %v212
    %v214 = vpop.f32.mrf.mxu0
    %v215 = vadd.f32 %v100, %v214
    %216 = vdwg.mxu0
    %v217 = vmax.f32 %v199, 0.0
    %v218 = vmax.f32 %v213, 0.0
    %v219 = vmax.f32 %v201, 0.0
    %v220 = vmax.f32 %v215, 0.0
    %v221 = vpack.c.bf16 %v219, %v217
    %v222 = vpack.c.bf16 %v220, %v218
    %v223 = vld [vmem:[#allocation5] sm:$0xff]
    %v224 = vld [vmem:[#allocation5 + $0x8] sm:$0xff]
    %v225 = vld [vmem:[#allocation5 + $0x10] sm:$0xff]
    %v226 = vld [vmem:[#allocation5 + $0x18] sm:$0xff]
    %v227 = vld [vmem:[#allocation5 + $0x20] sm:$0xff]
    %v228 = vld [vmem:[#allocation5 + $0x28] sm:$0xff]
    %v229 = vld [vmem:[#allocation5 + $0x30] sm:$0xff]
    %v230 = vld [vmem:[#allocation5 + $0x38] sm:$0xff]
    %v231 = vld [vmem:[#allocation5 + $0x40] sm:$0xff]
    %v232 = vld [vmem:[#allocation5 + $0x48] sm:$0xff]
    %v233 = vld [vmem:[#allocation5 + $0x50] sm:$0xff]
    %v234 = vld [vmem:[#allocation5 + $0x58] sm:$0xff]
    %v235 = vld [vmem:[#allocation5 + $0x60] sm:$0xff]
    %v236 = vld [vmem:[#allocation5 + $0x68] sm:$0xff]
    %v237 = vld [vmem:[#allocation5 + $0x70] sm:$0xff]
    %v238 = vld [vmem:[#allocation5 + $0x78] sm:$0xff]
    %v239 = vld [vmem:[#allocation5 + $0x80] sm:$0xff]
    %v240 = vld [vmem:[#allocation5 + $0x88] sm:$0xff]
    %v241 = vld [vmem:[#allocation5 + $0x90] sm:$0xff]
    %v242 = vld [vmem:[#allocation5 + $0x98] sm:$0xff]
    %v243 = vld [vmem:[#allocation5 + $0xa0] sm:$0xff]
    %v244 = vld [vmem:[#allocation5 + $0xa8] sm:$0xff]
    %v245 = vld [vmem:[#allocation5 + $0xb0] sm:$0xff]
    %v246 = vld [vmem:[#allocation5 + $0xb8] sm:$0xff]
    %v247 = vld [vmem:[#allocation5 + $0xc0] sm:$0xff]
    %v248 = vld [vmem:[#allocation5 + $0xc8] sm:$0xff]
    %v249 = vld [vmem:[#allocation5 + $0xd0] sm:$0xff]
    %v250 = vld [vmem:[#allocation5 + $0xd8] sm:$0xff]
    %v251 = vld [vmem:[#allocation5 + $0xe0] sm:$0xff]
    %v252 = vld [vmem:[#allocation5 + $0xe8] sm:$0xff]
    %v253 = vld [vmem:[#allocation5 + $0xf0] sm:$0xff]
    %v254 = vld [vmem:[#allocation5 + $0xf8] sm:$0xff]
    %v255 = vld [vmem:[#allocation7] sm:$0x3]
    %v257 = vperm.slane %v255, 0
    %v258 = vperm.slane %v255, 1
    %v293 = vunpack.c.l.b16 %v223
    %v294 = vunpack.c.h.b16 %v223
    %v295 = vunpack.c.l.b16 %v224
    %v296 = vunpack.c.h.b16 %v224
    %v297 = vunpack.c.l.b16 %v225
    %v298 = vunpack.c.h.b16 %v225
    %v299 = vunpack.c.l.b16 %v226
    %v300 = vunpack.c.h.b16 %v226
    %v301 = vunpack.c.l.b16 %v227
    %v302 = vunpack.c.h.b16 %v227
    %v303 = vunpack.c.l.b16 %v228
    %v304 = vunpack.c.h.b16 %v228
    %v305 = vunpack.c.l.b16 %v229
    %v306 = vunpack.c.h.b16 %v229
    %v307 = vunpack.c.l.b16 %v230
    %v308 = vunpack.c.h.b16 %v230
    %v309 = vunpack.c.l.b16 %v231
    %v310 = vunpack.c.h.b16 %v231
    %v311 = vunpack.c.l.b16 %v232
    %v312 = vunpack.c.h.b16 %v232
    %v313 = vunpack.c.l.b16 %v233
    %v314 = vunpack.c.h.b16 %v233
    %v315 = vunpack.c.l.b16 %v234
    %v316 = vunpack.c.h.b16 %v234
    %v317 = vunpack.c.l.b16 %v235
    %v318 = vunpack.c.h.b16 %v235
    %v319 = vunpack.c.l.b16 %v236
    %v320 = vunpack.c.h.b16 %v236
    %v321 = vunpack.c.l.b16 %v237
    %v322 = vunpack.c.h.b16 %v237
    %v323 = vunpack.c.l.b16 %v238
    %v324 = vunpack.c.h.b16 %v238
    %v325 = vunpack.c.l.b16 %v239
    %v326 = vunpack.c.h.b16 %v239
    %v327 = vunpack.c.l.b16 %v240
    %v328 = vunpack.c.h.b16 %v240
    %v329 = vunpack.c.l.b16 %v241
    %v330 = vunpack.c.h.b16 %v241
    %v331 = vunpack.c.l.b16 %v242
    %v332 = vunpack.c.h.b16 %v242
    %v333 = vunpack.c.l.b16 %v243
    %v334 = vunpack.c.h.b16 %v243
    %v335 = vunpack.c.l.b16 %v244
    %v336 = vunpack.c.h.b16 %v244
    %v337 = vunpack.c.l.b16 %v245
    %v338 = vunpack.c.h.b16 %v245
    %v339 = vunpack.c.l.b16 %v246
    %v340 = vunpack.c.h.b16 %v246
    %v341 = vunpack.c.l.b16 %v247
    %v342 = vunpack.c.h.b16 %v247
    %v343 = vunpack.c.l.b16 %v248
    %v344 = vunpack.c.h.b16 %v248
    %v345 = vunpack.c.l.b16 %v249
    %v346 = vunpack.c.h.b16 %v249
    %v347 = vunpack.c.l.b16 %v250
    %v348 = vunpack.c.h.b16 %v250
    %v349 = vunpack.c.l.b16 %v251
    %v350 = vunpack.c.h.b16 %v251
    %v351 = vunpack.c.l.b16 %v252
    %v352 = vunpack.c.h.b16 %v252
    %v353 = vunpack.c.l.b16 %v253
    %v354 = vunpack.c.h.b16 %v253
    %v355 = vunpack.c.l.b16 %v254
    %v356 = vunpack.c.h.b16 %v254
    %v357 = vpack.c.b16 %v295, %v293
    %v358 = vpack.c.b16 %v296, %v294
    %v359 = vpack.c.b16 %v299, %v297
    %v360 = vpack.c.b16 %v300, %v298
    %v361 = vpack.c.b16 %v303, %v301
    %v362 = vpack.c.b16 %v304, %v302
    %v363 = vpack.c.b16 %v307, %v305
    %v364 = vpack.c.b16 %v308, %v306
    %v365 = vpack.c.b16 %v311, %v309
    %v366 = vpack.c.b16 %v312, %v310
    %v367 = vpack.c.b16 %v315, %v313
    %v368 = vpack.c.b16 %v316, %v314
    %v369 = vpack.c.b16 %v319, %v317
    %v370 = vpack.c.b16 %v320, %v318
    %v371 = vpack.c.b16 %v323, %v321
    %v372 = vpack.c.b16 %v324, %v322
    %v373 = vpack.c.b16 %v327, %v325
    %v374 = vpack.c.b16 %v328, %v326
    %v375 = vpack.c.b16 %v331, %v329
    %v376 = vpack.c.b16 %v332, %v330
    %v377 = vpack.c.b16 %v335, %v333
    %v378 = vpack.c.b16 %v336, %v334
    %v379 = vpack.c.b16 %v339, %v337
    %v380 = vpack.c.b16 %v340, %v338
    %v381 = vpack.c.b16 %v343, %v341
    %v382 = vpack.c.b16 %v344, %v342
    %v383 = vpack.c.b16 %v347, %v345
    %v384 = vpack.c.b16 %v348, %v346
    %v385 = vpack.c.b16 %v351, %v349
    %v386 = vpack.c.b16 %v352, %v350
    %v387 = vpack.c.b16 %v355, %v353
    %v388 = vpack.c.b16 %v356, %v354
    %421 = vmatpush.bf16.msra.mxu0 %v371
    %422 = vmatpush.bf16.msra.mxu0 %v369
    %423 = vmatpush.bf16.msra.mxu0 %v367
    %424 = vmatpush.bf16.msra.mxu0 %v365
    %425 = vmatpush.bf16.msra.mxu0 %v363
    %426 = vmatpush.bf16.msra.mxu0 %v361
    %427 = vmatpush.bf16.msra.mxu0 %v359
    %428 = vmatpush.bf16.msra.mxu0 %v357
    %429 = vmatmul.bf16.gmra.mxu0 %v221
    %v430 = vpop.f32.mrf.mxu0
    %v431 = vadd.f32 %v257, %v430
    %v432 = vpop.f32.mrf.mxu0
    %v433 = vadd.f32 %v257, %v432
    %434 = vdwg.mxu0
    %435 = vmatpush.bf16.msra.mxu0 %v387
    %436 = vmatpush.bf16.msra.mxu0 %v385
    %437 = vmatpush.bf16.msra.mxu0 %v383
    %438 = vmatpush.bf16.msra.mxu0 %v381
    %439 = vmatpush.bf16.msra.mxu0 %v379
    %440 = vmatpush.bf16.msra.mxu0 %v377
    %441 = vmatpush.bf16.msra.mxu0 %v375
    %442 = vmatpush.bf16.msra.mxu0 %v373
    %443 = vmatmul.bf16.gmra.mxu0 %v222
    %v444 = vpop.f32.mrf.mxu0
    %v445 = vadd.f32 %v431, %v444
    %v446 = vpop.f32.mrf.mxu0
    %v447 = vadd.f32 %v433, %v446
    %448 = vdwg.mxu0
    %449 = vmatpush.bf16.msra.mxu0 %v372
    %450 = vmatpush.bf16.msra.mxu0 %v370
    %451 = vmatpush.bf16.msra.mxu0 %v368
    %452 = vmatpush.bf16.msra.mxu0 %v366
    %453 = vmatpush.bf16.msra.mxu0 %v364
    %454 = vmatpush.bf16.msra.mxu0 %v362
    %455 = vmatpush.bf16.msra.mxu0 %v360
    %456 = vmatpush.bf16.msra.mxu0 %v358
    %457 = vmatmul.bf16.gmra.mxu0 %v221
    %v458 = vpop.f32.mrf.mxu0
    %v459 = vadd.f32 %v258, %v458
    %v460 = vpop.f32.mrf.mxu0
    %v461 = vadd.f32 %v258, %v460
    %462 = vdwg.mxu0
    %463 = vmatpush.bf16.msra.mxu0 %v388
    %464 = vmatpush.bf16.msra.mxu0 %v386
    %465 = vmatpush.bf16.msra.mxu0 %v384
    %466 = vmatpush.bf16.msra.mxu0 %v382
    %467 = vmatpush.bf16.msra.mxu0 %v380
    %468 = vmatpush.bf16.msra.mxu0 %v378
    %469 = vmatpush.bf16.msra.mxu0 %v376
    %470 = vmatpush.bf16.msra.mxu0 %v374
    %471 = vmatmul.bf16.gmra.mxu0 %v222
    %v472 = vpop.f32.mrf.mxu0
    %v473 = vadd.f32 %v459, %v472
    %v474 = vpop.f32.mrf.mxu0
    %v475 = vadd.f32 %v461, %v474
    %476 = vdwg.mxu0
    %v477 = vmax.f32 %v445, 0.0
    %v478 = vmax.f32 %v473, 0.0
    %v479 = vmax.f32 %v447, 0.0
    %v480 = vmax.f32 %v475, 0.0
    %v481 = vpack.c.bf16 %v479, %v477
    %v482 = vpack.c.bf16 %v480, %v478
    %v483 = vld [vmem:[%s5] sm:$0xf]
    %v484 = vld [vmem:[%s5 + $0x4] sm:$0xf]
    %v485 = vld [vmem:[%s5 + $0x8] sm:$0xf]
    %v486 = vld [vmem:[%s5 + $0xc] sm:$0xf]
    %v487 = vld [vmem:[%s5 + $0x10] sm:$0xf]
    %v488 = vld [vmem:[%s5 + $0x14] sm:$0xf]
    %v489 = vld [vmem:[%s5 + $0x18] sm:$0xf]
    %v490 = vld [vmem:[%s5 + $0x1c] sm:$0xf]
    %v491 = vld [vmem:[%s5 + $0x20] sm:$0xf]
    %v492 = vld [vmem:[%s5 + $0x24] sm:$0xf]
    %v493 = vld [vmem:[%s5 + $0x28] sm:$0xf]
    %v494 = vld [vmem:[%s5 + $0x2c] sm:$0xf]
    %v495 = vld [vmem:[%s5 + $0x30] sm:$0xf]
    %v496 = vld [vmem:[%s5 + $0x34] sm:$0xf]
    %v497 = vld [vmem:[%s5 + $0x38] sm:$0xf]
    %v498 = vld [vmem:[%s5 + $0x3c] sm:$0xf]
    %v499 = vld [vmem:[%s5 + $0x40] sm:$0xf]
    %v500 = vld [vmem:[%s5 + $0x44] sm:$0xf]
    %v501 = vld [vmem:[%s5 + $0x48] sm:$0xf]
    %v502 = vld [vmem:[%s5 + $0x4c] sm:$0xf]
    %v503 = vld [vmem:[%s5 + $0x50] sm:$0xf]
    %v504 = vld [vmem:[%s5 + $0x54] sm:$0xf]
    %v505 = vld [vmem:[%s5 + $0x58] sm:$0xf]
    %v506 = vld [vmem:[%s5 + $0x5c] sm:$0xf]
    %v507 = vld [vmem:[%s5 + $0x60] sm:$0xf]
    %v508 = vld [vmem:[%s5 + $0x64] sm:$0xf]
    %v509 = vld [vmem:[%s5 + $0x68] sm:$0xf]
    %v510 = vld [vmem:[%s5 + $0x6c] sm:$0xf]
    %v511 = vld [vmem:[%s5 + $0x70] sm:$0xf]
    %v512 = vld [vmem:[%s5 + $0x74] sm:$0xf]
    %v513 = vld [vmem:[%s5 + $0x78] sm:$0xf]
    %v514 = vld [vmem:[%s5 + $0x7c] sm:$0xf]
    %v515 = vld [vmem:[%s6] sm:$0x1]
    %v517 = vperm.slane %v515, 0
    %v551 = vunpack.c.l.b16 %v483
    %v552 = vunpack.c.l.b16 %v484
    %v553 = vunpack.c.l.b16 %v485
    %v554 = vunpack.c.l.b16 %v486
    %v555 = vunpack.c.l.b16 %v487
    %v556 = vunpack.c.l.b16 %v488
    %v557 = vunpack.c.l.b16 %v489
    %v558 = vunpack.c.l.b16 %v490
    %v559 = vunpack.c.l.b16 %v491
    %v560 = vunpack.c.l.b16 %v492
    %v561 = vunpack.c.l.b16 %v493
    %v562 = vunpack.c.l.b16 %v494
    %v563 = vunpack.c.l.b16 %v495
    %v564 = vunpack.c.l.b16 %v496
    %v565 = vunpack.c.l.b16 %v497
    %v566 = vunpack.c.l.b16 %v498
    %v567 = vunpack.c.l.b16 %v499
    %v568 = vunpack.c.l.b16 %v500
    %v569 = vunpack.c.l.b16 %v501
    %v570 = vunpack.c.l.b16 %v502
    %v571 = vunpack.c.l.b16 %v503
    %v572 = vunpack.c.l.b16 %v504
    %v573 = vunpack.c.l.b16 %v505
    %v574 = vunpack.c.l.b16 %v506
    %v575 = vunpack.c.l.b16 %v507
    %v576 = vunpack.c.l.b16 %v508
    %v577 = vunpack.c.l.b16 %v509
    %v578 = vunpack.c.l.b16 %v510
    %v579 = vunpack.c.l.b16 %v511
    %v580 = vunpack.c.l.b16 %v512
    %v581 = vunpack.c.l.b16 %v513
    %v582 = vunpack.c.l.b16 %v514
    %v583 = vpack.c.b16 %v552, %v551
    %v584 = vpack.c.b16 %v554, %v553
    %v585 = vpack.c.b16 %v556, %v555
    %v586 = vpack.c.b16 %v558, %v557
    %v587 = vpack.c.b16 %v560, %v559
    %v588 = vpack.c.b16 %v562, %v561
    %v589 = vpack.c.b16 %v564, %v563
    %v590 = vpack.c.b16 %v566, %v565
    %v591 = vpack.c.b16 %v568, %v567
    %v592 = vpack.c.b16 %v570, %v569
    %v593 = vpack.c.b16 %v572, %v571
    %v594 = vpack.c.b16 %v574, %v573
    %v595 = vpack.c.b16 %v576, %v575
    %v596 = vpack.c.b16 %v578, %v577
    %v597 = vpack.c.b16 %v580, %v579
    %v598 = vpack.c.b16 %v582, %v581
    %615 = vmatpush.bf16.msra.mxu0 %v590
    %616 = vmatpush.bf16.msra.mxu0 %v589
    %617 = vmatpush.bf16.msra.mxu0 %v588
    %618 = vmatpush.bf16.msra.mxu0 %v587
    %619 = vmatpush.bf16.msra.mxu0 %v586
    %620 = vmatpush.bf16.msra.mxu0 %v585
    %621 = vmatpush.bf16.msra.mxu0 %v584
    %622 = vmatpush.bf16.msra.mxu0 %v583
    %623 = vmatmul.bf16.gmra.mxu0 %v481
    %v624 = vpop.f32.mrf.mxu0
    %v625 = vadd.f32 %v517, %v624
    %v626 = vpop.f32.mrf.mxu0
    %v627 = vadd.f32 %v517, %v626
    %628 = vdwg.mxu0
    %629 = vmatpush.bf16.msra.mxu0 %v598
    %630 = vmatpush.bf16.msra.mxu0 %v597
    %631 = vmatpush.bf16.msra.mxu0 %v596
    %632 = vmatpush.bf16.msra.mxu0 %v595
    %633 = vmatpush.bf16.msra.mxu0 %v594
    %634 = vmatpush.bf16.msra.mxu0 %v593
    %635 = vmatpush.bf16.msra.mxu0 %v592
    %636 = vmatpush.bf16.msra.mxu0 %v591
    %637 = vmatmul.bf16.gmra.mxu0 %v482
    %v638 = vpop.f32.mrf.mxu0
    %v639 = vadd.f32 %v625, %v638
    %v640 = vpop.f32.mrf.mxu0
    %v641 = vadd.f32 %v627, %v640
    %642 = vdwg.mxu0
    %vm643 = vcmask 15360
    %644 = vst.msk [vmem:[%s7] sm:$0xff] %vm643, %v639
    %645 = vst.msk [vmem:[%s7 + $0x8] sm:$0xff] %vm643, %v641
    // Predicated region
    $region42: #{tpu_custom_call.1} parent=1 // pred_check
      _
    $region43: #{tpu_custom_call.1} parent=1 // pred_check_branch
      %647 = sbr.rel (0) target = $region45
    $region44: #{tpu_custom_call.1} parent=1 // pred_region
      _
    $region45: #{tpu_custom_call.1} parent=1 // pred_fallthru
      _
    // Predicated region
    $region46: #{tpu_custom_call.1} parent=1 // pred_check
      _
    $region47: #{tpu_custom_call.1} parent=1 // pred_check_branch
      %649 = sbr.rel (0) target = $region49
    $region48: #{tpu_custom_call.1} parent=1 // pred_region
      _
    $region49: #{tpu_custom_call.1} parent=1 // pred_fallthru
      _
    %650 = vsyncpa [#allocation4], 1
    %651 = vsyncpa [#allocation6], 1

</llo_original>
